<compile_context>
chip_gen: v5e
topology: v5e:2x2
jax: 0.10.0
libtpu: 0.0.40
codegen_flags: <defaults>
</compile_context>

<pallas_src>
import functools

import jax
import jax.numpy as jnp
from jax.experimental import pallas as pl
from jax.experimental.pallas import tpu as pltpu

NEG_INF = -1e30          # masked-max sentinel (keep in f32)
BIG = 1e30
LEAKY_SLOPE = 0.01       # torch.nn.LeakyReLU default
EDGE_TILE = 256          # edge-chunk size for the running-max aggregation
NODE_TILE = 512          # node-chunk size for the global max pool
# TODO(synk): for large graphs add a node-tile grid axis (dimension_semantics=
#             ("parallel",...)) and size the edge tiles against v7x's 64 MiB VMEM.


def _leaky_relu(x):
    return jnp.where(x > 0, x, LEAKY_SLOPE * x)


def _masked_running_max(values, sel_mask, tile):
    """values [R, D] f32, sel_mask [Q, R] in {0,1} -> [Q, D] masked max.

    Tiled over R with additive masking (add + max on the VPU); rows of the
    output with no selected entry stay at ~NEG_INF.
    """
    R, D = values.shape
    Q = sel_mask.shape[0]
    acc = jnp.full((Q, D), NEG_INF, jnp.float32)
    for start in range(0, R, tile):
        stop = min(start + tile, R)
        v = values[start:stop, :]                         # [t, D]
        m = sel_mask[:, start:stop]                       # [Q, t]
        cand = jnp.max(v[None, :, :] + (m[:, :, None] - 1.0) * BIG, axis=1)
        acc = jnp.maximum(acc, cand)
    return acc


# --------------------------------------------------------------------------
# Single fused kernel: edge MLP -> node embed -> GINE (max aggr) -> pool -> head
# --------------------------------------------------------------------------
def gin_fused_kernel(eps_ref,
                     x_ref, eattr_ref, src_ref, dst_ref, batch_ref,
                     ew1, eb1, ew2, eb2, ew3, eb3,
                     xw, xb,
                     gw1, gb1, gw2, gb2,
                     hw1, hb1, hw2, hb2,
                     o_ref, s_ref):
    N = x_ref.shape[0]
    E = eattr_ref.shape[0]
    B = o_ref.shape[0]

    # ---- block 0: edge-attr MLP  Lin(8,16) ReLU Lin(16,16) ReLU Lin(16,16) ----
    e = jnp.maximum(
        jnp.dot(eattr_ref[...], ew1[...], preferred_element_type=jnp.float32) + eb1[...], 0.0)
    e = jnp.maximum(
        jnp.dot(e, ew2[...], preferred_element_type=jnp.float32) + eb2[...], 0.0)
    e = jnp.dot(e, ew3[...], preferred_element_type=jnp.float32) + eb3[...]

    # ---- node embedding (MLPembd): Linear(4,16) + ReLU ----
    # TODO(synk): MLPembd is not defined in the reference source; implemented
    #             as a single Linear + ReLU node embedding.
    h = jnp.maximum(
        jnp.dot(x_ref[...], xw[...], preferred_element_type=jnp.float32) + xb[...], 0.0)

    # ---- masks built in-kernel from int32 id vectors ----
    node_iota = jax.lax.broadcasted_iota(jnp.int32, (N, E), 0)
    src_oh = (node_iota == src_ref[...]).astype(jnp.float32)       # [N, E]
    dmask = (node_iota == dst_ref[...]).astype(jnp.float32)        # [N, E]

    # ---- gather x[src] as one-hot matmul on the MXU: x_src[e,:] = h[src[e],:] ----
    x_src = jax.lax.dot_general(src_oh, h, (((0,), (0,)), ((), ())),
                                preferred_element_type=jnp.float32)  # [E, H]

    # ---- GINE message + scatter-max aggregation (E-tiled running max) ----
    msg = jnp.maximum(x_src + e, 0.0)                               # [E, H], >= 0
    aggr = _masked_running_max(msg, dmask, EDGE_TILE)               # [N, H]
    # nodes without incoming edges -> 0 (derived from the reduced value itself)
    aggr = jnp.where(aggr > 0.5 * NEG_INF, aggr, 0.0)

    eps = eps_ref[0]
    hx = (1.0 + eps) * h + aggr
    hx = _leaky_relu(jnp.dot(hx, gw1[...], preferred_element_type=jnp.float32) + gb1[...])
    hx = jnp.dot(hx, gw2[...], preferred_element_type=jnp.float32) + gb2[...]

    # ---- global max pool over nodes of each graph ----
    graph_iota = jax.lax.broadcasted_iota(jnp.int32, (B, N), 0)
    bmask = (graph_iota == batch_ref[...]).astype(jnp.float32)      # [B, N]
    pooled = _masked_running_max(hx, bmask, NODE_TILE)              # [B, H]

    # ---- output head: Lin(16,16) (+folded BN) LeakyReLU [Dropout=id] Lin(16,1) ----
    z = _leaky_relu(jnp.dot(pooled, hw1[...], preferred_element_type=jnp.float32) + hb1[...])
    out = jnp.dot(z, hw2[...], preferred_element_type=jnp.float32) + hb2[...]
    o_ref[...] = out
    s_ref[...] = jax.nn.sigmoid(out)


# --------------------------------------------------------------------------
# Wrapper: fold BN, build int32 id rows, single pallas_call
# --------------------------------------------------------------------------
def gin_forward(params, x, edge_index, batch, edge_attr, num_graphs):
    N = x.shape[0]
    E = edge_attr.shape[0]
    B = int(num_graphs)

    # Fold inference-mode BatchNorm into the first head Linear (done once in glue).
    hw1, hb1, gamma, beta, rmean, rvar, hw2, hb2 = params["head"]
    scale = gamma * jax.lax.rsqrt(rvar + 1e-5)          # (1, hidden)
    hw1f = hw1 * scale
    hb1f = (hb1 - rmean) * scale + beta

    src_row = edge_index[0].astype(jnp.int32).reshape(1, E)
    dst_row = edge_index[1].astype(jnp.int32).reshape(1, E)
    batch_row = batch.astype(jnp.int32).reshape(1, N)

    args = (params["eps"], x, edge_attr, src_row, dst_row, batch_row,
            *params["edge_mlp"], *params["embed"], *params["gine_mlp"],
            hw1f, hb1f, hw2, hb2)

    in_specs = [pl.BlockSpec(memory_space=pltpu.MemorySpace.SMEM)] + [
        pl.BlockSpec(a.shape, lambda i, n=a.ndim: (0,) * n) for a in args[1:]
    ]

    out_dim = hw2.shape[1]
    out_shape = (jax.ShapeDtypeStruct((B, out_dim), jnp.float32),
                 jax.ShapeDtypeStruct((B, out_dim), jnp.float32))
    out_specs = (pl.BlockSpec((B, out_dim), lambda i: (0, 0)),
                 pl.BlockSpec((B, out_dim), lambda i: (0, 0)))

    return pl.pallas_call(
        gin_fused_kernel,
        out_shape=out_shape,
        grid=(1,),
        in_specs=in_specs,
        out_specs=out_specs,
        compiler_params=pltpu.CompilerParams(dimension_semantics=("arbitrary",)),
    )(*args)


# --------------------------------------------------------------------------
# Parameter init (matches torch.nn.Linear default init semantics)
# --------------------------------------------------------------------------
def _linear_init(key, fan_in, fan_out):
    k1, k2 = jax.random.split(key)
    bound = 1.0 / float(fan_in) ** 0.5
    w = jax.random.uniform(k1, (fan_in, fan_out), jnp.float32, -bound, bound)
    b = jax.random.uniform(k2, (1, fan_out), jnp.float32, -bound, bound)
    return w, b


def init_params(key, in_x=4, in_edge=8, hidden=16, out_global=1):
    keys = jax.random.split(key, 8)
    ew1, eb1 = _linear_init(keys[0], in_edge, hidden)
    ew2, eb2 = _linear_init(keys[1], hidden, hidden)
    ew3, eb3 = _linear_init(keys[2], hidden, hidden)
    xw, xb = _linear_init(keys[3], in_x, hidden)
    gw1, gb1 = _linear_init(keys[4], hidden, hidden)
    gw2, gb2 = _linear_init(keys[5], hidden, hidden)
    hw1, hb1 = _linear_init(keys[6], hidden, hidden)
    hw2, hb2 = _linear_init(keys[7], hidden, out_global)
    return {
        "edge_mlp": (ew1, eb1, ew2, eb2, ew3, eb3),
        "embed": (xw, xb),
        "eps": jnp.zeros((1,), jnp.float32),                 # train_eps=True, init 0
        "gine_mlp": (gw1, gb1, gw2, gb2),
        "head": (hw1, hb1,
                 jnp.ones((1, hidden), jnp.float32),         # BN gamma
                 jnp.zeros((1, hidden), jnp.float32),        # BN beta
                 jnp.zeros((1, hidden), jnp.float32),        # BN running mean
                 jnp.ones((1, hidden), jnp.float32),         # BN running var
                 hw2, hb2),
    }


if __name__ == "__main__":
    N, E, B = 8, 16, 2
    IN_X, IN_E = 4, 8

    key = jax.random.PRNGKey(0)
    kx, ke, kp = jax.random.split(key, 3)

    x = jax.random.normal(kx, (N, IN_X), jnp.float32)
    edge_attr = jax.random.normal(ke, (E, IN_E), jnp.float32)
    # deterministic connectivity: every node has >= 1 incoming edge
    dst = jnp.arange(E, dtype=jnp.int32) % N
    src = (jnp.arange(E, dtype=jnp.int32) * 3 + 1) % N
    edge_index = jnp.stack([src, dst], axis=0)
    batch = jnp.array([0, 0, 0, 0, 1, 1, 1, 1], dtype=jnp.int32)

    params = init_params(kp, in_x=IN_X, in_edge=IN_E, hidden=16, out_global=1)

    forward = jax.jit(functools.partial(gin_forward, num_graphs=B))
    h, h_sigmoid = forward(params, x, edge_index, batch, edge_attr)
    jax.block_until_ready((h, h_sigmoid))

    assert h.shape == (B, 1) and h_sigmoid.shape == (B, 1)
    assert bool(jnp.all(jnp.isfinite(h)))
    assert bool(jnp.all((h_sigmoid >= 0) & (h_sigmoid <= 1)))
    print("KERNEL_OK")
</pallas_src>

<mosaic_0001>
module attributes {stable_mosaic.version = 11 : i64} {
  func.func @gin_fused_kernel(%arg0: i32, %arg1: memref<1xf32, #tpu.memory_space<smem>>, %arg2: memref<8x4xf32, #tpu.memory_space<vmem>>, %arg3: memref<16x8xf32, #tpu.memory_space<vmem>>, %arg4: memref<1x16xi32, #tpu.memory_space<vmem>>, %arg5: memref<1x16xi32, #tpu.memory_space<vmem>>, %arg6: memref<1x8xi32, #tpu.memory_space<vmem>>, %arg7: memref<8x16xf32, #tpu.memory_space<vmem>>, %arg8: memref<1x16xf32, #tpu.memory_space<vmem>>, %arg9: memref<16x16xf32, #tpu.memory_space<vmem>>, %arg10: memref<1x16xf32, #tpu.memory_space<vmem>>, %arg11: memref<16x16xf32, #tpu.memory_space<vmem>>, %arg12: memref<1x16xf32, #tpu.memory_space<vmem>>, %arg13: memref<4x16xf32, #tpu.memory_space<vmem>>, %arg14: memref<1x16xf32, #tpu.memory_space<vmem>>, %arg15: memref<16x16xf32, #tpu.memory_space<vmem>>, %arg16: memref<1x16xf32, #tpu.memory_space<vmem>>, %arg17: memref<16x16xf32, #tpu.memory_space<vmem>>, %arg18: memref<1x16xf32, #tpu.memory_space<vmem>>, %arg19: memref<16x16xf32, #tpu.memory_space<vmem>>, %arg20: memref<1x16xf32, #tpu.memory_space<vmem>>, %arg21: memref<16x1xf32, #tpu.memory_space<vmem>>, %arg22: memref<1x1xf32, #tpu.memory_space<vmem>>, %arg23: memref<2x1xf32, #tpu.memory_space<vmem>>, %arg24: memref<2x1xf32, #tpu.memory_space<vmem>>) attributes {dimension_semantics = [#tpu.dimension_semantics<arbitrary>], iteration_bounds = array<i64: 1>, scalar_prefetch = 0 : i64, scratch_operands = 0 : i64, tpu.core_type = #tpu.core_type<tc>, window_params = [{transform_indices = @transform_0, window_bounds = array<i64: 1>}, {pipeline_mode = #tpu.pipeline_mode<synchronous>, transform_indices = @transform_1, window_bounds = array<i64: 8, 4>}, {pipeline_mode = #tpu.pipeline_mode<synchronous>, transform_indices = @transform_2, window_bounds = array<i64: 16, 8>}, {pipeline_mode = #tpu.pipeline_mode<synchronous>, transform_indices = @transform_3, window_bounds = array<i64: 1, 16>}, {pipeline_mode = #tpu.pipeline_mode<synchronous>, transform_indices = @transform_4, window_bounds = array<i64: 1, 16>}, {pipeline_mode = #tpu.pipeline_mode<synchronous>, transform_indices = @transform_5, window_bounds = array<i64: 1, 8>}, {pipeline_mode = #tpu.pipeline_mode<synchronous>, transform_indices = @transform_6, window_bounds = array<i64: 8, 16>}, {pipeline_mode = #tpu.pipeline_mode<synchronous>, transform_indices = @transform_7, window_bounds = array<i64: 1, 16>}, {pipeline_mode = #tpu.pipeline_mode<synchronous>, transform_indices = @transform_8, window_bounds = array<i64: 16, 16>}, {pipeline_mode = #tpu.pipeline_mode<synchronous>, transform_indices = @transform_9, window_bounds = array<i64: 1, 16>}, {pipeline_mode = #tpu.pipeline_mode<synchronous>, transform_indices = @transform_10, window_bounds = array<i64: 16, 16>}, {pipeline_mode = #tpu.pipeline_mode<synchronous>, transform_indices = @transform_11, window_bounds = array<i64: 1, 16>}, {pipeline_mode = #tpu.pipeline_mode<synchronous>, transform_indices = @transform_12, window_bounds = array<i64: 4, 16>}, {pipeline_mode = #tpu.pipeline_mode<synchronous>, transform_indices = @transform_13, window_bounds = array<i64: 1, 16>}, {pipeline_mode = #tpu.pipeline_mode<synchronous>, transform_indices = @transform_14, window_bounds = array<i64: 16, 16>}, {pipeline_mode = #tpu.pipeline_mode<synchronous>, transform_indices = @transform_15, window_bounds = array<i64: 1, 16>}, {pipeline_mode = #tpu.pipeline_mode<synchronous>, transform_indices = @transform_16, window_bounds = array<i64: 16, 16>}, {pipeline_mode = #tpu.pipeline_mode<synchronous>, transform_indices = @transform_17, window_bounds = array<i64: 1, 16>}, {pipeline_mode = #tpu.pipeline_mode<synchronous>, transform_indices = @transform_18, window_bounds = array<i64: 16, 16>}, {pipeline_mode = #tpu.pipeline_mode<synchronous>, transform_indices = @transform_19, window_bounds = array<i64: 1, 16>}, {pipeline_mode = #tpu.pipeline_mode<synchronous>, transform_indices = @transform_20, window_bounds = array<i64: 16, 1>}, {pipeline_mode = #tpu.pipeline_mode<synchronous>, transform_indices = @transform_21, window_bounds = array<i64: 1, 1>}, {pipeline_mode = #tpu.pipeline_mode<synchronous>, transform_indices = @transform_22, window_bounds = array<i64: 2, 1>}, {pipeline_mode = #tpu.pipeline_mode<synchronous>, transform_indices = @transform_23, window_bounds = array<i64: 2, 1>}]} {
    %c0 = arith.constant 0 : index
    %c0_0 = arith.constant 0 : index
    %0 = vector.load %arg3[%c0, %c0_0] : memref<16x8xf32, #tpu.memory_space<vmem>>, vector<16x8xf32>
    %c0_1 = arith.constant 0 : index
    %c0_2 = arith.constant 0 : index
    %1 = vector.load %arg7[%c0_1, %c0_2] : memref<8x16xf32, #tpu.memory_space<vmem>>, vector<8x16xf32>
    %cst = arith.constant dense<0.000000e+00> : vector<16x16xf32>
    %2 = tpu.matmul %0, %1, %cst {dimension_numbers = #tpu.dot_dimension_numbers<[1], [0], [0], [1], [0, 0, 1, 1], [], []>} : vector<16x8xf32>, vector<8x16xf32>, vector<16x16xf32> -> vector<16x16xf32>
    %c0_3 = arith.constant 0 : index
    %c0_4 = arith.constant 0 : index
    %3 = vector.load %arg8[%c0_3, %c0_4] : memref<1x16xf32, #tpu.memory_space<vmem>>, vector<1x16xf32>
    %4 = vector.broadcast %3 : vector<1x16xf32> to vector<16x16xf32>
    %5 = arith.addf %2, %4 : vector<16x16xf32>
    %cst_5 = arith.constant 0.000000e+00 : f32
    %6 = vector.broadcast %cst_5 : f32 to vector<16x16xf32>
    %7 = arith.maximumf %5, %6 : vector<16x16xf32>
    %c0_6 = arith.constant 0 : index
    %c0_7 = arith.constant 0 : index
    %8 = vector.load %arg9[%c0_6, %c0_7] : memref<16x16xf32, #tpu.memory_space<vmem>>, vector<16x16xf32>
    %cst_8 = arith.constant dense<0.000000e+00> : vector<16x16xf32>
    %9 = tpu.matmul %7, %8, %cst_8 {dimension_numbers = #tpu.dot_dimension_numbers<[1], [0], [0], [1], [0, 0, 1, 1], [], []>} : vector<16x16xf32>, vector<16x16xf32>, vector<16x16xf32> -> vector<16x16xf32>
    %c0_9 = arith.constant 0 : index
    %c0_10 = arith.constant 0 : index
    %10 = vector.load %arg10[%c0_9, %c0_10] : memref<1x16xf32, #tpu.memory_space<vmem>>, vector<1x16xf32>
    %11 = vector.broadcast %10 : vector<1x16xf32> to vector<16x16xf32>
    %12 = arith.addf %9, %11 : vector<16x16xf32>
    %cst_11 = arith.constant 0.000000e+00 : f32
    %13 = vector.broadcast %cst_11 : f32 to vector<16x16xf32>
    %14 = arith.maximumf %12, %13 : vector<16x16xf32>
    %c0_12 = arith.constant 0 : index
    %c0_13 = arith.constant 0 : index
    %15 = vector.load %arg11[%c0_12, %c0_13] : memref<16x16xf32, #tpu.memory_space<vmem>>, vector<16x16xf32>
    %cst_14 = arith.constant dense<0.000000e+00> : vector<16x16xf32>
    %16 = tpu.matmul %14, %15, %cst_14 {dimension_numbers = #tpu.dot_dimension_numbers<[1], [0], [0], [1], [0, 0, 1, 1], [], []>} : vector<16x16xf32>, vector<16x16xf32>, vector<16x16xf32> -> vector<16x16xf32>
    %c0_15 = arith.constant 0 : index
    %c0_16 = arith.constant 0 : index
    %17 = vector.load %arg12[%c0_15, %c0_16] : memref<1x16xf32, #tpu.memory_space<vmem>>, vector<1x16xf32>
    %18 = vector.broadcast %17 : vector<1x16xf32> to vector<16x16xf32>
    %19 = arith.addf %16, %18 : vector<16x16xf32>
    %c0_17 = arith.constant 0 : index
    %c0_18 = arith.constant 0 : index
    %20 = vector.load %arg2[%c0_17, %c0_18] : memref<8x4xf32, #tpu.memory_space<vmem>>, vector<8x4xf32>
    %c0_19 = arith.constant 0 : index
    %c0_20 = arith.constant 0 : index
    %21 = vector.load %arg13[%c0_19, %c0_20] : memref<4x16xf32, #tpu.memory_space<vmem>>, vector<4x16xf32>
    %cst_21 = arith.constant dense<0.000000e+00> : vector<8x16xf32>
    %22 = tpu.matmul %20, %21, %cst_21 {dimension_numbers = #tpu.dot_dimension_numbers<[1], [0], [0], [1], [0, 0, 1, 1], [], []>} : vector<8x4xf32>, vector<4x16xf32>, vector<8x16xf32> -> vector<8x16xf32>
    %c0_22 = arith.constant 0 : index
    %c0_23 = arith.constant 0 : index
    %23 = vector.load %arg14[%c0_22, %c0_23] : memref<1x16xf32, #tpu.memory_space<vmem>>, vector<1x16xf32>
    %24 = vector.broadcast %23 : vector<1x16xf32> to vector<8x16xf32>
    %25 = arith.addf %22, %24 : vector<8x16xf32>
    %cst_24 = arith.constant 0.000000e+00 : f32
    %26 = vector.broadcast %cst_24 : f32 to vector<8x16xf32>
    %27 = arith.maximumf %25, %26 : vector<8x16xf32>
    %28 = tpu.iota {dimensions = array<i32: 0>} : vector<8x16xi32>
    %c0_25 = arith.constant 0 : index
    %c0_26 = arith.constant 0 : index
    %29 = vector.load %arg4[%c0_25, %c0_26] : memref<1x16xi32, #tpu.memory_space<vmem>>, vector<1x16xi32>
    %30 = vector.broadcast %29 : vector<1x16xi32> to vector<8x16xi32>
    %31 = arith.cmpi eq, %28, %30 : vector<8x16xi32>
    %32 = arith.extui %31 : vector<8x16xi1> to vector<8x16xi32>
    %33 = arith.sitofp %32 : vector<8x16xi32> to vector<8x16xf32>
    %c0_27 = arith.constant 0 : index
    %c0_28 = arith.constant 0 : index
    %34 = vector.load %arg5[%c0_27, %c0_28] : memref<1x16xi32, #tpu.memory_space<vmem>>, vector<1x16xi32>
    %35 = vector.broadcast %34 : vector<1x16xi32> to vector<8x16xi32>
    %36 = arith.cmpi eq, %28, %35 : vector<8x16xi32>
    %37 = arith.extui %36 : vector<8x16xi1> to vector<8x16xi32>
    %38 = arith.sitofp %37 : vector<8x16xi32> to vector<8x16xf32>
    %cst_29 = arith.constant dense<0.000000e+00> : vector<16x16xf32>
    %39 = tpu.matmul %33, %27, %cst_29 {dimension_numbers = #tpu.dot_dimension_numbers<[0], [0], [1], [1], [0, 1, 1, 1], [], []>} : vector<8x16xf32>, vector<8x16xf32>, vector<16x16xf32> -> vector<16x16xf32>
    %40 = arith.addf %39, %19 : vector<16x16xf32>
    %cst_30 = arith.constant 0.000000e+00 : f32
    %41 = vector.broadcast %cst_30 : f32 to vector<16x16xf32>
    %42 = arith.maximumf %40, %41 : vector<16x16xf32>
    %cst_31 = arith.constant -1.000000e+30 : f32
    %43 = vector.broadcast %cst_31 : f32 to vector<8x16xf32>
    %44 = vector.shape_cast %42 : vector<16x16xf32> to vector<1x16x16xf32>
    %45 = vector.shape_cast %38 : vector<8x16xf32> to vector<8x16x1xf32>
    %cst_32 = arith.constant 1.000000e+00 : f32
    %46 = vector.broadcast %cst_32 : f32 to vector<8x16x1xf32>
    %47 = arith.subf %45, %46 : vector<8x16x1xf32>
    %cst_33 = arith.constant 1.000000e+30 : f32
    %48 = vector.broadcast %cst_33 : f32 to vector<8x16x1xf32>
    %49 = arith.mulf %47, %48 : vector<8x16x1xf32>
    %50 = vector.broadcast %44 : vector<1x16x16xf32> to vector<8x16x16xf32>
    %51 = vector.broadcast %49 : vector<8x16x1xf32> to vector<8x16x16xf32>
    %52 = arith.addf %50, %51 : vector<8x16x16xf32>
    %cst_34 = arith.constant dense<0xFF800000> : vector<8x16xf32>
    %53 = vector.multi_reduction <maximumf>, %52, %cst_34 [1] : vector<8x16x16xf32> to vector<8x16xf32>
    %54 = arith.maximumf %43, %53 : vector<8x16xf32>
    %cst_35 = arith.constant -5.000000e+29 : f32
    %55 = vector.broadcast %cst_35 : f32 to vector<8x16xf32>
    %56 = arith.cmpf ogt, %54, %55 : vector<8x16xf32>
    %cst_36 = arith.constant 0.000000e+00 : f32
    %57 = vector.broadcast %cst_36 : f32 to vector<8x16xf32>
    %58 = arith.select %56, %54, %57 : vector<8x16xi1>, vector<8x16xf32>
    %c0_37 = arith.constant 0 : index
    %59 = memref.load %arg1[%c0_37] : memref<1xf32, #tpu.memory_space<smem>>
    %cst_38 = arith.constant 1.000000e+00 : f32
    %60 = arith.addf %cst_38, %59 : f32
    %61 = vector.broadcast %60 : f32 to vector<8x16xf32>
    %62 = arith.mulf %61, %27 : vector<8x16xf32>
    %63 = arith.addf %62, %58 : vector<8x16xf32>
    %c0_39 = arith.constant 0 : index
    %c0_40 = arith.constant 0 : index
    %64 = vector.load %arg15[%c0_39, %c0_40] : memref<16x16xf32, #tpu.memory_space<vmem>>, vector<16x16xf32>
    %cst_41 = arith.constant dense<0.000000e+00> : vector<8x16xf32>
    %65 = tpu.matmul %63, %64, %cst_41 {dimension_numbers = #tpu.dot_dimension_numbers<[1], [0], [0], [1], [0, 0, 1, 1], [], []>} : vector<8x16xf32>, vector<16x16xf32>, vector<8x16xf32> -> vector<8x16xf32>
    %c0_42 = arith.constant 0 : index
    %c0_43 = arith.constant 0 : index
    %66 = vector.load %arg16[%c0_42, %c0_43] : memref<1x16xf32, #tpu.memory_space<vmem>>, vector<1x16xf32>
    %67 = vector.broadcast %66 : vector<1x16xf32> to vector<8x16xf32>
    %68 = arith.addf %65, %67 : vector<8x16xf32>
    %cst_44 = arith.constant 0.000000e+00 : f32
    %69 = vector.broadcast %cst_44 : f32 to vector<8x16xf32>
    %70 = arith.cmpf ogt, %68, %69 : vector<8x16xf32>
    %cst_45 = arith.constant 0.00999999977 : f32
    %71 = vector.broadcast %cst_45 : f32 to vector<8x16xf32>
    %72 = arith.mulf %71, %68 : vector<8x16xf32>
    %73 = arith.select %70, %68, %72 : vector<8x16xi1>, vector<8x16xf32>
    %c0_46 = arith.constant 0 : index
    %c0_47 = arith.constant 0 : index
    %74 = vector.load %arg17[%c0_46, %c0_47] : memref<16x16xf32, #tpu.memory_space<vmem>>, vector<16x16xf32>
    %cst_48 = arith.constant dense<0.000000e+00> : vector<8x16xf32>
    %75 = tpu.matmul %73, %74, %cst_48 {dimension_numbers = #tpu.dot_dimension_numbers<[1], [0], [0], [1], [0, 0, 1, 1], [], []>} : vector<8x16xf32>, vector<16x16xf32>, vector<8x16xf32> -> vector<8x16xf32>
    %c0_49 = arith.constant 0 : index
    %c0_50 = arith.constant 0 : index
    %76 = vector.load %arg18[%c0_49, %c0_50] : memref<1x16xf32, #tpu.memory_space<vmem>>, vector<1x16xf32>
    %77 = vector.broadcast %76 : vector<1x16xf32> to vector<8x16xf32>
    %78 = arith.addf %75, %77 : vector<8x16xf32>
    %79 = tpu.iota {dimensions = array<i32: 0>} : vector<2x8xi32>
    %c0_51 = arith.constant 0 : index
    %c0_52 = arith.constant 0 : index
    %80 = vector.load %arg6[%c0_51, %c0_52] : memref<1x8xi32, #tpu.memory_space<vmem>>, vector<1x8xi32>
    %81 = vector.broadcast %80 : vector<1x8xi32> to vector<2x8xi32>
    %82 = arith.cmpi eq, %79, %81 : vector<2x8xi32>
    %83 = arith.extui %82 : vector<2x8xi1> to vector<2x8xi32>
    %84 = arith.sitofp %83 : vector<2x8xi32> to vector<2x8xf32>
    %cst_53 = arith.constant -1.000000e+30 : f32
    %85 = vector.broadcast %cst_53 : f32 to vector<2x16xf32>
    %86 = vector.shape_cast %78 : vector<8x16xf32> to vector<1x8x16xf32>
    %87 = vector.shape_cast %84 : vector<2x8xf32> to vector<2x8x1xf32>
    %cst_54 = arith.constant 1.000000e+00 : f32
    %88 = vector.broadcast %cst_54 : f32 to vector<2x8x1xf32>
    %89 = arith.subf %87, %88 : vector<2x8x1xf32>
    %cst_55 = arith.constant 1.000000e+30 : f32
    %90 = vector.broadcast %cst_55 : f32 to vector<2x8x1xf32>
    %91 = arith.mulf %89, %90 : vector<2x8x1xf32>
    %92 = vector.broadcast %86 : vector<1x8x16xf32> to vector<2x8x16xf32>
    %93 = vector.broadcast %91 : vector<2x8x1xf32> to vector<2x8x16xf32>
    %94 = arith.addf %92, %93 : vector<2x8x16xf32>
    %cst_56 = arith.constant dense<0xFF800000> : vector<2x16xf32>
    %95 = vector.multi_reduction <maximumf>, %94, %cst_56 [1] : vector<2x8x16xf32> to vector<2x16xf32>
    %96 = arith.maximumf %85, %95 : vector<2x16xf32>
    %c0_57 = arith.constant 0 : index
    %c0_58 = arith.constant 0 : index
    %97 = vector.load %arg19[%c0_57, %c0_58] : memref<16x16xf32, #tpu.memory_space<vmem>>, vector<16x16xf32>
    %cst_59 = arith.constant dense<0.000000e+00> : vector<2x16xf32>
    %98 = tpu.matmul %96, %97, %cst_59 {dimension_numbers = #tpu.dot_dimension_numbers<[1], [0], [0], [1], [0, 0, 1, 1], [], []>} : vector<2x16xf32>, vector<16x16xf32>, vector<2x16xf32> -> vector<2x16xf32>
    %c0_60 = arith.constant 0 : index
    %c0_61 = arith.constant 0 : index
    %99 = vector.load %arg20[%c0_60, %c0_61] : memref<1x16xf32, #tpu.memory_space<vmem>>, vector<1x16xf32>
    %100 = vector.broadcast %99 : vector<1x16xf32> to vector<2x16xf32>
    %101 = arith.addf %98, %100 : vector<2x16xf32>
    %cst_62 = arith.constant 0.000000e+00 : f32
    %102 = vector.broadcast %cst_62 : f32 to vector<2x16xf32>
    %103 = arith.cmpf ogt, %101, %102 : vector<2x16xf32>
    %cst_63 = arith.constant 0.00999999977 : f32
    %104 = vector.broadcast %cst_63 : f32 to vector<2x16xf32>
    %105 = arith.mulf %104, %101 : vector<2x16xf32>
    %106 = arith.select %103, %101, %105 : vector<2x16xi1>, vector<2x16xf32>
    %c0_64 = arith.constant 0 : index
    %c0_65 = arith.constant 0 : index
    %107 = vector.load %arg21[%c0_64, %c0_65] : memref<16x1xf32, #tpu.memory_space<vmem>>, vector<16x1xf32>
    %cst_66 = arith.constant dense<0.000000e+00> : vector<2x1xf32>
    %108 = tpu.matmul %106, %107, %cst_66 {dimension_numbers = #tpu.dot_dimension_numbers<[1], [0], [0], [1], [0, 0, 1, 1], [], []>} : vector<2x16xf32>, vector<16x1xf32>, vector<2x1xf32> -> vector<2x1xf32>
    %c0_67 = arith.constant 0 : index
    %c0_68 = arith.constant 0 : index
    %109 = vector.load %arg22[%c0_67, %c0_68] : memref<1x1xf32, #tpu.memory_space<vmem>>, vector<1x1xf32>
    %110 = vector.broadcast %109 : vector<1x1xf32> to vector<2x1xf32>
    %111 = arith.addf %108, %110 : vector<2x1xf32>
    %c0_69 = arith.constant 0 : index
    %c0_70 = arith.constant 0 : index
    %112 = vector.load %arg23[%c0_69, %c0_70] : memref<2x1xf32, #tpu.memory_space<vmem>>, vector<2x1xf32>
    tpu.vector_store %arg23[%c0_69, %c0_70], %111 {strides = array<i32>} : memref<2x1xf32, #tpu.memory_space<vmem>>, vector<2x1xf32>,
    %113 = arith.negf %111 : vector<2x1xf32>
    %114 = math.exp %113 : vector<2x1xf32>
    %cst_71 = arith.constant 1.000000e+00 : f32
    %115 = vector.broadcast %cst_71 : f32 to vector<2x1xf32>
    %116 = arith.addf %115, %114 : vector<2x1xf32>
    %117 = arith.divf %115, %116 : vector<2x1xf32>
    %c0_72 = arith.constant 0 : index
    %c0_73 = arith.constant 0 : index
    %118 = vector.load %arg24[%c0_72, %c0_73] : memref<2x1xf32, #tpu.memory_space<vmem>>, vector<2x1xf32>
    tpu.vector_store %arg24[%c0_72, %c0_73], %117 {strides = array<i32>} : memref<2x1xf32, #tpu.memory_space<vmem>>, vector<2x1xf32>,
    return
  }
  func.func @transform_0(%arg0: i32) -> i32 {
    %c0_i32 = arith.constant 0 : i32
    %c0_i32_0 = arith.constant 0 : i32
    return %c0_i32 : i32
  }
  func.func @transform_1(%arg0: i32) -> (i32, i32) {
    %c0_i32 = arith.constant 0 : i32
    %c0_i32_0 = arith.constant 0 : i32
    %c0_i32_1 = arith.constant 0 : i32
    return %c0_i32, %c0_i32_0 : i32, i32
  }
  func.func @transform_2(%arg0: i32) -> (i32, i32) {
    %c0_i32 = arith.constant 0 : i32
    %c0_i32_0 = arith.constant 0 : i32
    %c0_i32_1 = arith.constant 0 : i32
    return %c0_i32, %c0_i32_0 : i32, i32
  }
  func.func @transform_3(%arg0: i32) -> (i32, i32) {
    %c0_i32 = arith.constant 0 : i32
    %c0_i32_0 = arith.constant 0 : i32
    %c0_i32_1 = arith.constant 0 : i32
    return %c0_i32, %c0_i32_0 : i32, i32
  }
  func.func @transform_4(%arg0: i32) -> (i32, i32) {
    %c0_i32 = arith.constant 0 : i32
    %c0_i32_0 = arith.constant 0 : i32
    %c0_i32_1 = arith.constant 0 : i32
    return %c0_i32, %c0_i32_0 : i32, i32
  }
  func.func @transform_5(%arg0: i32) -> (i32, i32) {
    %c0_i32 = arith.constant 0 : i32
    %c0_i32_0 = arith.constant 0 : i32
    %c0_i32_1 = arith.constant 0 : i32
    return %c0_i32, %c0_i32_0 : i32, i32
  }
  func.func @transform_6(%arg0: i32) -> (i32, i32) {
    %c0_i32 = arith.constant 0 : i32
    %c0_i32_0 = arith.constant 0 : i32
    %c0_i32_1 = arith.constant 0 : i32
    return %c0_i32, %c0_i32_0 : i32, i32
  }
  func.func @transform_7(%arg0: i32) -> (i32, i32) {
    %c0_i32 = arith.constant 0 : i32
    %c0_i32_0 = arith.constant 0 : i32
    %c0_i32_1 = arith.constant 0 : i32
    return %c0_i32, %c0_i32_0 : i32, i32
  }
  func.func @transform_8(%arg0: i32) -> (i32, i32) {
    %c0_i32 = arith.constant 0 : i32
    %c0_i32_0 = arith.constant 0 : i32
    %c0_i32_1 = arith.constant 0 : i32
    return %c0_i32, %c0_i32_0 : i32, i32
  }
  func.func @transform_9(%arg0: i32) -> (i32, i32) {
    %c0_i32 = arith.constant 0 : i32
    %c0_i32_0 = arith.constant 0 : i32
    %c0_i32_1 = arith.constant 0 : i32
    return %c0_i32, %c0_i32_0 : i32, i32
  }
  func.func @transform_10(%arg0: i32) -> (i32, i32) {
    %c0_i32 = arith.constant 0 : i32
    %c0_i32_0 = arith.constant 0 : i32
    %c0_i32_1 = arith.constant 0 : i32
    return %c0_i32, %c0_i32_0 : i32, i32
  }
  func.func @transform_11(%arg0: i32) -> (i32, i32) {
    %c0_i32 = arith.constant 0 : i32
    %c0_i32_0 = arith.constant 0 : i32
    %c0_i32_1 = arith.constant 0 : i32
    return %c0_i32, %c0_i32_0 : i32, i32
  }
  func.func @transform_12(%arg0: i32) -> (i32, i32) {
    %c0_i32 = arith.constant 0 : i32
    %c0_i32_0 = arith.constant 0 : i32
    %c0_i32_1 = arith.constant 0 : i32
    return %c0_i32, %c0_i32_0 : i32, i32
  }
  func.func @transform_13(%arg0: i32) -> (i32, i32) {
    %c0_i32 = arith.constant 0 : i32
    %c0_i32_0 = arith.constant 0 : i32
    %c0_i32_1 = arith.constant 0 : i32
    return %c0_i32, %c0_i32_0 : i32, i32
  }
  func.func @transform_14(%arg0: i32) -> (i32, i32) {
    %c0_i32 = arith.constant 0 : i32
    %c0_i32_0 = arith.constant 0 : i32
    %c0_i32_1 = arith.constant 0 : i32
    return %c0_i32, %c0_i32_0 : i32, i32
  }
  func.func @transform_15(%arg0: i32) -> (i32, i32) {
    %c0_i32 = arith.constant 0 : i32
    %c0_i32_0 = arith.constant 0 : i32
    %c0_i32_1 = arith.constant 0 : i32
    return %c0_i32, %c0_i32_0 : i32, i32
  }
  func.func @transform_16(%arg0: i32) -> (i32, i32) {
    %c0_i32 = arith.constant 0 : i32
    %c0_i32_0 = arith.constant 0 : i32
    %c0_i32_1 = arith.constant 0 : i32
    return %c0_i32, %c0_i32_0 : i32, i32
  }
  func.func @transform_17(%arg0: i32) -> (i32, i32) {
    %c0_i32 = arith.constant 0 : i32
    %c0_i32_0 = arith.constant 0 : i32
    %c0_i32_1 = arith.constant 0 : i32
    return %c0_i32, %c0_i32_0 : i32, i32
  }
  func.func @transform_18(%arg0: i32) -> (i32, i32) {
    %c0_i32 = arith.constant 0 : i32
    %c0_i32_0 = arith.constant 0 : i32
    %c0_i32_1 = arith.constant 0 : i32
    return %c0_i32, %c0_i32_0 : i32, i32
  }
  func.func @transform_19(%arg0: i32) -> (i32, i32) {
    %c0_i32 = arith.constant 0 : i32
    %c0_i32_0 = arith.constant 0 : i32
    %c0_i32_1 = arith.constant 0 : i32
    return %c0_i32, %c0_i32_0 : i32, i32
  }
  func.func @transform_20(%arg0: i32) -> (i32, i32) {
    %c0_i32 = arith.constant 0 : i32
    %c0_i32_0 = arith.constant 0 : i32
    %c0_i32_1 = arith.constant 0 : i32
    return %c0_i32, %c0_i32_0 : i32, i32
  }
  func.func @transform_21(%arg0: i32) -> (i32, i32) {
    %c0_i32 = arith.constant 0 : i32
    %c0_i32_0 = arith.constant 0 : i32
    %c0_i32_1 = arith.constant 0 : i32
    return %c0_i32, %c0_i32_0 : i32, i32
  }
  func.func @transform_22(%arg0: i32) -> (i32, i32) {
    %c0_i32 = arith.constant 0 : i32
    %c0_i32_0 = arith.constant 0 : i32
    %c0_i32_1 = arith.constant 0 : i32
    return %c0_i32, %c0_i32_0 : i32, i32
  }
  func.func @transform_23(%arg0: i32) -> (i32, i32) {
    %c0_i32 = arith.constant 0 : i32
    %c0_i32_0 = arith.constant 0 : i32
    %c0_i32_1 = arith.constant 0 : i32
    return %c0_i32, %c0_i32_0 : i32, i32
  }
}

</mosaic_0001>

<llo_original>
// kernel: gin_forward.1
$region0: #{gin_forward.1}
  #allocation0 [shape = 'u32[]', space=smem, size = 0x4, offset = 0x4, fixed_abs, tag = 'smem constant byte address 0x4 - core index']
  #allocation1 [shape = 'u32[72,128]{1,0:T(1,128)}', space=vmem, size = 0x9000, scoped, tag = 'internal scratch']
  #allocation2 [shape = 'f32[1]{0:T(128)S(6)}', space=smem, size = 0x200, scoped, tag = 'scoped memory for gin_forward.1']
  #allocation3 [shape = 'f32[1,1]{1,0:T(1,128)S(1)}', space=vmem, size = 0x200, scoped, tag = 'scoped memory for gin_forward.1']
  %s0 = inlined_call_operand.<no memory space> [shape: f32[1], index: 0, kind: input, shape index: {}]
  %s1 = inlined_call_operand.vmem [shape: f32[8,4], index: 1, kind: input, shape index: {}]
  %s2 = inlined_call_operand.vmem [shape: f32[16,8], index: 2, kind: input, shape index: {}]
  %s3 = inlined_call_operand.vmem [shape: s32[1,16], index: 3, kind: input, shape index: {}]
  %s4 = inlined_call_operand.vmem [shape: s32[1,16], index: 4, kind: input, shape index: {}]
  %s5 = inlined_call_operand.vmem [shape: s32[1,8], index: 5, kind: input, shape index: {}]
  %s6 = inlined_call_operand.hbm [shape: f32[8,16], index: 6, kind: input, shape index: {}]
  %s7 = inlined_call_operand.vmem [shape: f32[1,16], index: 7, kind: input, shape index: {}]
  %s8 = inlined_call_operand.vmem [shape: f32[16,16], index: 8, kind: input, shape index: {}]
  %s9 = inlined_call_operand.vmem [shape: f32[1,16], index: 9, kind: input, shape index: {}]
  %s10 = inlined_call_operand.vmem [shape: f32[16,16], index: 10, kind: input, shape index: {}]
  %s11 = inlined_call_operand.vmem [shape: f32[1,16], index: 11, kind: input, shape index: {}]
  %s12 = inlined_call_operand.vmem [shape: f32[4,16], index: 12, kind: input, shape index: {}]
  %s13 = inlined_call_operand.vmem [shape: f32[1,16], index: 13, kind: input, shape index: {}]
  %s14 = inlined_call_operand.vmem [shape: f32[16,16], index: 14, kind: input, shape index: {}]
  %s15 = inlined_call_operand.vmem [shape: f32[1,16], index: 15, kind: input, shape index: {}]
  %s16 = inlined_call_operand.vmem [shape: f32[16,16], index: 16, kind: input, shape index: {}]
  %s17 = inlined_call_operand.vmem [shape: f32[1,16], index: 17, kind: input, shape index: {}]
  %s18 = inlined_call_operand.vmem [shape: f32[16,16], index: 18, kind: input, shape index: {}]
  %s19 = inlined_call_operand.vmem [shape: f32[1,16], index: 19, kind: input, shape index: {}]
  %s20 = inlined_call_operand.vmem [shape: f32[16,1], index: 20, kind: input, shape index: {}]
  %s21 = inlined_call_operand.<no memory space> [shape: f32[1,1], index: 21, kind: input, shape index: {}]
  %s22 = inlined_call_operand.vmem [shape: f32[2,1], index: 22, kind: output, shape index: {0}]
  %s23 = inlined_call_operand.vmem [shape: f32[2,1], index: 23, kind: output, shape index: {1}]
  %24 = xla_tuple %s22, %s23
  %s25 = sld [smem:[#allocation0]]
  $region110: #{gin_forward.1} parent=0
    _
  %s27 = ssub.s32 1, %s25
  %s28 = scalar_select 0, %s27, %s25
  %29 = sst [smem:[#allocation2]] %s0
  %v30 = vstv %s21
  %31 = vst [vmem:[#allocation3] sm:$0x1] %v30
  $region1: #{gin_forward.1} parent=0
    #allocation4 [shape = 'u8[4096]{0}', space=vmem, size = 0x1000, scoped, tag = 'input window, operand 6, single buffered']
    #allocation5 [shape = 's32[1]{0}', space=sflag, size = 0x4, scoped, tag = 'scoped memory for gin_forward.1']
    %32 = vsyncpa [#allocation5], 0
    // Predicated region
    $region2: #{gin_forward.1} parent=1 // pred_check
      _
    $region3: #{gin_forward.1} parent=1 // pred_check_branch
      %34 = sbr.rel (0) target = $region5
    $region4: #{gin_forward.1} parent=1 // pred_region
      _
    $region5: #{gin_forward.1} parent=1 // pred_fallthru
      _
    // Predicated region
    $region6: #{gin_forward.1} parent=1 // pred_check
      _
    $region7: #{gin_forward.1} parent=1 // pred_check_branch
      %36 = sbr.rel (0) target = $region9
    $region8: #{gin_forward.1} parent=1 // pred_region
      _
    $region9: #{gin_forward.1} parent=1 // pred_fallthru
      _
    // Predicated region
    $region10: #{gin_forward.1} parent=1 // pred_check
      _
    $region11: #{gin_forward.1} parent=1 // pred_check_branch
      %38 = sbr.rel (0) target = $region13
    $region12: #{gin_forward.1} parent=1 // pred_region
      _
    $region13: #{gin_forward.1} parent=1 // pred_fallthru
      _
    // Predicated region
    $region14: #{gin_forward.1} parent=1 // pred_check
      _
    $region15: #{gin_forward.1} parent=1 // pred_check_branch
      %40 = sbr.rel (0) target = $region17
    $region16: #{gin_forward.1} parent=1 // pred_region
      _
    $region17: #{gin_forward.1} parent=1 // pred_fallthru
      _
    // Predicated region
    $region18: #{gin_forward.1} parent=1 // pred_check
      _
    $region19: #{gin_forward.1} parent=1 // pred_check_branch
      %42 = sbr.rel (0) target = $region21
    $region20: #{gin_forward.1} parent=1 // pred_region
      _
    $region21: #{gin_forward.1} parent=1 // pred_fallthru
      _
    // Predicated region
    $region22: #{gin_forward.1} parent=1 // pred_check
      _
    $region23: #{gin_forward.1} parent=1 // pred_check_branch
      %44 = sbr.rel (0) target = $region25
    $region24: #{gin_forward.1} parent=1 // pred_region
      _
    $region25: #{gin_forward.1} parent=1 // pred_fallthru
      _
    // Predicated region
    $region26: #{gin_forward.1} parent=1 // pred_check
      _
    $region27: #{gin_forward.1} parent=1 // pred_check_branch
      %46 = sbr.rel (0) target = $region29
    $region28: #{gin_forward.1} parent=1 // pred_region
      %48 = vsyncadd [#allocation5], 0
      %s50 = sshll.u32 %s6, 4
      %s51 = int_to_ptr.hbm [resolvable:$true] %s50
      %s52 = sshll.u32 [#allocation4], 4
      %s53 = int_to_ptr.vmem [resolvable:$true] %s52
      %55 = dma.hbm_to_vmem [thread:$0]  %s51, 128, %s53, [#allocation5]
    $region29: #{gin_forward.1} parent=1 // pred_fallthru
      _
    // Predicated region
    $region30: #{gin_forward.1} parent=1 // pred_check
      _
    $region31: #{gin_forward.1} parent=1 // pred_check_branch
      %57 = sbr.rel (0) target = $region33
    $region32: #{gin_forward.1} parent=1 // pred_region
      _
    $region33: #{gin_forward.1} parent=1 // pred_fallthru
      _
    // Predicated region
    $region34: #{gin_forward.1} parent=1 // pred_check
      _
    $region35: #{gin_forward.1} parent=1 // pred_check_branch
      %59 = sbr.rel (0) target = $region37
    $region36: #{gin_forward.1} parent=1 // pred_region
      _
    $region37: #{gin_forward.1} parent=1 // pred_fallthru
      _
    // Predicated region
    $region38: #{gin_forward.1} parent=1 // pred_check
      _
    $region39: #{gin_forward.1} parent=1 // pred_check_branch
      %61 = sbr.rel (0) target = $region41
    $region40: #{gin_forward.1} parent=1 // pred_region
      _
    $region41: #{gin_forward.1} parent=1 // pred_fallthru
      _
    // Predicated region
    $region42: #{gin_forward.1} parent=1 // pred_check
      _
    $region43: #{gin_forward.1} parent=1 // pred_check_branch
      %63 = sbr.rel (0) target = $region45
    $region44: #{gin_forward.1} parent=1 // pred_region
      _
    $region45: #{gin_forward.1} parent=1 // pred_fallthru
      _
    // Predicated region
    $region46: #{gin_forward.1} parent=1 // pred_check
      _
    $region47: #{gin_forward.1} parent=1 // pred_check_branch
      %65 = sbr.rel (0) target = $region49
    $region48: #{gin_forward.1} parent=1 // pred_region
      _
    $region49: #{gin_forward.1} parent=1 // pred_fallthru
      _
    // Predicated region
    $region50: #{gin_forward.1} parent=1 // pred_check
      _
    $region51: #{gin_forward.1} parent=1 // pred_check_branch
      %67 = sbr.rel (0) target = $region53
    $region52: #{gin_forward.1} parent=1 // pred_region
      _
    $region53: #{gin_forward.1} parent=1 // pred_fallthru
      _
    // Predicated region
    $region54: #{gin_forward.1} parent=1 // pred_check
      _
    $region55: #{gin_forward.1} parent=1 // pred_check_branch
      %69 = sbr.rel (0) target = $region57
    $region56: #{gin_forward.1} parent=1 // pred_region
      _
    $region57: #{gin_forward.1} parent=1 // pred_fallthru
      _
    // Predicated region
    $region58: #{gin_forward.1} parent=1 // pred_check
      _
    $region59: #{gin_forward.1} parent=1 // pred_check_branch
      %71 = sbr.rel (0) target = $region61
    $region60: #{gin_forward.1} parent=1 // pred_region
      _
    $region61: #{gin_forward.1} parent=1 // pred_fallthru
      _
    // Predicated region
    $region62: #{gin_forward.1} parent=1 // pred_check
      _
    $region63: #{gin_forward.1} parent=1 // pred_check_branch
      %73 = sbr.rel (0) target = $region65
    $region64: #{gin_forward.1} parent=1 // pred_region
      _
    $region65: #{gin_forward.1} parent=1 // pred_fallthru
      _
    // Predicated region
    $region66: #{gin_forward.1} parent=1 // pred_check
      _
    $region67: #{gin_forward.1} parent=1 // pred_check_branch
      %75 = sbr.rel (0) target = $region69
    $region68: #{gin_forward.1} parent=1 // pred_region
      _
    $region69: #{gin_forward.1} parent=1 // pred_fallthru
      _
    // Predicated region
    $region70: #{gin_forward.1} parent=1 // pred_check
      _
    $region71: #{gin_forward.1} parent=1 // pred_check_branch
      %77 = sbr.rel (0) target = $region73
    $region72: #{gin_forward.1} parent=1 // pred_region
      _
    $region73: #{gin_forward.1} parent=1 // pred_fallthru
      _
    // Predicated region
    $region74: #{gin_forward.1} parent=1 // pred_check
      _
    $region75: #{gin_forward.1} parent=1 // pred_check_branch
      %79 = sbr.rel (0) target = $region77
    $region76: #{gin_forward.1} parent=1 // pred_region
      _
    $region77: #{gin_forward.1} parent=1 // pred_fallthru
      _
    // Predicated region
    $region78: #{gin_forward.1} parent=1 // pred_check
      _
    $region79: #{gin_forward.1} parent=1 // pred_check_branch
      %81 = sbr.rel (0) target = $region81
    $region80: #{gin_forward.1} parent=1 // pred_region
      _
    $region81: #{gin_forward.1} parent=1 // pred_fallthru
      _
    // Predicated region
    $region82: #{gin_forward.1} parent=1 // pred_check
      _
    $region83: #{gin_forward.1} parent=1 // pred_check_branch
      %83 = sbr.rel (0) target = $region85
    $region84: #{gin_forward.1} parent=1 // pred_region
      _
    $region85: #{gin_forward.1} parent=1 // pred_fallthru
      _
    // Predicated region
    $region86: #{gin_forward.1} parent=1 // pred_check
      _
    $region87: #{gin_forward.1} parent=1 // pred_check_branch
      %85 = sbr.rel (0) target = $region89
    $region88: #{gin_forward.1} parent=1 // pred_region
      _
    $region89: #{gin_forward.1} parent=1 // pred_fallthru
      _
    // Predicated region
    $region90: #{gin_forward.1} parent=1 // pred_check
      _
    $region91: #{gin_forward.1} parent=1 // pred_check_branch
      %87 = sbr.rel (0) target = $region93
    $region92: #{gin_forward.1} parent=1 // pred_region
      %89 = dma.done [#allocation5], 128
    $region93: #{gin_forward.1} parent=1 // pred_fallthru
      _
    %v90 = vld [vmem:[%s2] sm:$0xff]
    %v91 = vld [vmem:[%s2 + $0x8] sm:$0xff]
    %v92 = vld [vmem:[#allocation4] sm:$0xff]
    %v93 = vld [vmem:[%s7] sm:$0x1]
    %v95 = vperm.slane %v93, 0
    %vm97 = vcmask 64512
    %v99 = vsel %vm97, %v90, 0
    %v102 = vsel %vm97, %v91, 0
    %104 = vmatpush.msra.mxu0 0.0
    %105 = vmatpush.msra.mxu0 0.0
    %106 = vmatpush.msra.mxu0 0.0
    %107 = vmatpush.msra.mxu0 0.0
    %108 = vmatpush.msra.mxu0 0.0
    %109 = vmatpush.msra.mxu0 0.0
    %110 = vmatpush.msra.mxu0 0.0
    %111 = vmatpush.msra.mxu0 0.0
    %112 = vmatpush.msra.mxu0 0.0
    %113 = vmatpush.msra.mxu0 0.0
    %114 = vmatpush.msra.mxu0 0.0
    %115 = vmatpush.msra.mxu0 0.0
    %116 = vmatpush.msra.mxu0 0.0
    %117 = vmatpush.msra.mxu0 0.0
    %118 = vmatpush.msra.mxu0 0.0
    %119 = vmatpush.msra.mxu0 %v92
    %120 = vmatmul.f32.gmra.mxu0 %v99
    %v121 = vpop.f32.mrf.mxu0
    %v122 = vadd.f32 %v95, %v121
    %123 = vmatmul.f32.gmra.mxu0 %v102
    %v124 = vpop.f32.mrf.mxu0
    %v125 = vadd.f32 %v95, %v124
    %126 = vdwg.mxu0
    %v127 = vmax.f32 %v122, 0.0
    %v128 = vmax.f32 %v125, 0.0
    %v129 = vld [vmem:[%s8] sm:$0xff]
    %v130 = vld [vmem:[%s8 + $0x8] sm:$0xff]
    %v131 = vld [vmem:[%s9] sm:$0x1]
    %v133 = vperm.slane %v131, 0
    %vm135 = vcmask 130048
    %v137 = vsel %vm135, %v127, 0
    %v140 = vsel %vm135, %v128, 0
    %142 = vmatpush.msra.mxu0 0.0
    %143 = vmatpush.msra.mxu0 0.0
    %144 = vmatpush.msra.mxu0 0.0
    %145 = vmatpush.msra.mxu0 0.0
    %146 = vmatpush.msra.mxu0 0.0
    %147 = vmatpush.msra.mxu0 0.0
    %148 = vmatpush.msra.mxu0 0.0
    %149 = vmatpush.msra.mxu0 0.0
    %150 = vmatpush.msra.mxu0 0.0
    %151 = vmatpush.msra.mxu0 0.0
    %152 = vmatpush.msra.mxu0 0.0
    %153 = vmatpush.msra.mxu0 0.0
    %154 = vmatpush.msra.mxu0 0.0
    %155 = vmatpush.msra.mxu0 0.0
    %156 = vmatpush.msra.mxu0 %v130
    %157 = vmatpush.msra.mxu0 %v129
    %158 = vmatmul.f32.gmra.mxu0 %v137
    %v159 = vpop.f32.mrf.mxu0
    %v160 = vadd.f32 %v133, %v159
    %161 = vmatmul.f32.gmra.mxu0 %v140
    %v162 = vpop.f32.mrf.mxu0
    %v163 = vadd.f32 %v133, %v162
    %164 = vdwg.mxu0
    %v165 = vmax.f32 %v160, 0.0
    %v166 = vmax.f32 %v163, 0.0
    %v167 = vld [vmem:[%s10] sm:$0xff]
    %v168 = vld [vmem:[%s10 + $0x8] sm:$0xff]
    %v169 = vld [vmem:[%s11] sm:$0x1]
    %v171 = vperm.slane %v169, 0
    %v174 = vsel %vm135, %v165, 0
    %v177 = vsel %vm135, %v166, 0
    %179 = vmatpush.msra.mxu0 0.0
    %180 = vmatpush.msra.mxu0 0.0
    %181 = vmatpush.msra.mxu0 0.0
    %182 = vmatpush.msra.mxu0 0.0
    %183 = vmatpush.msra.mxu0 0.0
    %184 = vmatpush.msra.mxu0 0.0
    %185 = vmatpush.msra.mxu0 0.0
    %186 = vmatpush.msra.mxu0 0.0
    %187 = vmatpush.msra.mxu0 0.0
    %188 = vmatpush.msra.mxu0 0.0
    %189 = vmatpush.msra.mxu0 0.0
    %190 = vmatpush.msra.mxu0 0.0
    %191 = vmatpush.msra.mxu0 0.0
    %192 = vmatpush.msra.mxu0 0.0
    %193 = vmatpush.msra.mxu0 %v168
    %194 = vmatpush.msra.mxu0 %v167
    %195 = vmatmul.f32.gmra.mxu0 %v174
    %v196 = vpop.f32.mrf.mxu0
    %v197 = vadd.f32 %v171, %v196
    %198 = vmatmul.f32.gmra.mxu0 %v177
    %v199 = vpop.f32.mrf.mxu0
    %v200 = vadd.f32 %v171, %v199
    %201 = vdwg.mxu0
    %v202 = vld [vmem:[%s1] sm:$0xff]
    %v203 = vld [vmem:[%s12] sm:$0xf]
    %v204 = vld [vmem:[%s13] sm:$0x1]
    %v206 = vperm.slane %v204, 0
    %vm208 = vcmask 31744
    %v210 = vsel %vm208, %v202, 0
    %vm212 = vcmask 1043456
    %v214 = vsel %vm212, %v203, 0
    %216 = vmatpush.msra.mxu0 0.0
    %217 = vmatpush.msra.mxu0 0.0
    %218 = vmatpush.msra.mxu0 0.0
    %219 = vmatpush.msra.mxu0 0.0
    %220 = vmatpush.msra.mxu0 0.0
    %221 = vmatpush.msra.mxu0 0.0
    %222 = vmatpush.msra.mxu0 0.0
    %223 = vmatpush.msra.mxu0 0.0
    %224 = vmatpush.msra.mxu0 0.0
    %225 = vmatpush.msra.mxu0 0.0
    %226 = vmatpush.msra.mxu0 0.0
    %227 = vmatpush.msra.mxu0 0.0
    %228 = vmatpush.msra.mxu0 0.0
    %229 = vmatpush.msra.mxu0 0.0
    %230 = vmatpush.msra.mxu0 0.0
    %231 = vmatpush.msra.mxu0 %v214
    %232 = vmatmul.f32.gmra.mxu0 %v210
    %v233 = vpop.f32.mrf.mxu0
    %v234 = vadd.f32 %v206, %v233
    %235 = vdwg.mxu0
    %v236 = vmax.f32 %v234, 0.0
    %v237 = vlaneseq
    %v238 = vshrl.u32 %v237, 7
    %v239 = vld [vmem:[%s3] sm:$0x1]
    %v240 = vperm.slane %v239, 0
    %vm241 = vcmp.eq.s32.totalorder %v238, %v240
    %v242 = vsel %vm241, 1, 0
    %v243 = vcvt.s32.f32 %v242
    %v244 = vld [vmem:[%s4] sm:$0x1]
    %v245 = vperm.slane %v244, 0
    %vm246 = vcmp.eq.s32.totalorder %v238, %v245
    %v247 = vsel %vm246, 1, 0
    %v248 = vcvt.s32.f32 %v247
    %249 = vxpose.xlu0.b32.start [1/16] %v243, 128
    %250 = vxpose.xlu0.b32.cont [2/16] 0.0, 128
    %251 = vxpose.xlu0.b32.cont [3/16] 0.0, 128
    %252 = vxpose.xlu0.b32.cont [4/16] 0.0, 128
    %253 = vxpose.xlu0.b32.cont [5/16] 0.0, 128
    %254 = vxpose.xlu0.b32.cont [6/16] 0.0, 128
    %255 = vxpose.xlu0.b32.cont [7/16] 0.0, 128
    %256 = vxpose.xlu0.b32.cont [8/16] 0.0, 128
    %257 = vxpose.xlu0.b32.cont [9/16] 0.0, 128
    %258 = vxpose.xlu0.b32.cont [10/16] 0.0, 128
    %259 = vxpose.xlu0.b32.cont [11/16] 0.0, 128
    %260 = vxpose.xlu0.b32.cont [12/16] 0.0, 128
    %261 = vxpose.xlu0.b32.cont [13/16] 0.0, 128
    %262 = vxpose.xlu0.b32.cont [14/16] 0.0, 128
    %263 = vxpose.xlu0.b32.cont [15/16] 0.0, 128
    %264 = vxpose.xlu0.b32.end [16/16] 0.0, 128
    %v265 = vpop.trf.xlu0
    %v266 = vpop.trf.xlu0
    %v267 = vpop.trf.xlu0
    %v268 = vpop.trf.xlu0
    %v269 = vpop.trf.xlu0
    %v270 = vpop.trf.xlu0
    %v271 = vpop.trf.xlu0
    %v272 = vpop.trf.xlu0
    %v273 = vpop.trf.xlu0
    %v274 = vpop.trf.xlu0
    %v275 = vpop.trf.xlu0
    %v276 = vpop.trf.xlu0
    %v277 = vpop.trf.xlu0
    %v278 = vpop.trf.xlu0
    %v279 = vpop.trf.xlu0
    %v280 = vpop.trf.xlu0
    %v282 = vsel %vm97, %v265, 0
    %v285 = vsel %vm97, %v266, 0
    %287 = vmatpush.msra.mxu0 0.0
    %288 = vmatpush.msra.mxu0 0.0
    %289 = vmatpush.msra.mxu0 0.0
    %290 = vmatpush.msra.mxu0 0.0
    %291 = vmatpush.msra.mxu0 0.0
    %292 = vmatpush.msra.mxu0 0.0
    %293 = vmatpush.msra.mxu0 0.0
    %294 = vmatpush.msra.mxu0 0.0
    %295 = vmatpush.msra.mxu0 0.0
    %296 = vmatpush.msra.mxu0 0.0
    %297 = vmatpush.msra.mxu0 0.0
    %298 = vmatpush.msra.mxu0 0.0
    %299 = vmatpush.msra.mxu0 0.0
    %300 = vmatpush.msra.mxu0 0.0
    %301 = vmatpush.msra.mxu0 0.0
    %302 = vmatpush.msra.mxu0 %v236
    %303 = vmatmul.f32.gmra.mxu0 %v282
    %v304 = vpop.f32.mrf.mxu0
    %v305 = vadd.f32 %v197, %v304
    %306 = vmatmul.f32.gmra.mxu0 %v285
    %v307 = vpop.f32.mrf.mxu0
    %v308 = vadd.f32 %v200, %v307
    %309 = vdwg.mxu0
    %v310 = vmax.f32 %v305, 0.0
    %v311 = vmax.f32 %v308, 0.0
    %v312 = vperm.slane %v248, 0
    %v313 = vlaneseq
    %v314 = vshrl.u32 %v313, 7
    %316 = vset.pattern.permute.xlu0 %v314
    %317 = vperm.xlu0 %316, %v312
    %v318 = vpop.permute.xlu0 %317
    %v319 = vlaneseq
    %v320 = vshrl.u32 %v319, 7
    %v321 = vadd.s32 %v320, 8
    %322 = vset.pattern.permute.xlu0 %v321
    %323 = vperm.xlu0 %322, %v312
    %v324 = vpop.permute.xlu0 %323
    %v325 = vperm.slane %v248, 1
    %v326 = vlaneseq
    %v327 = vshrl.u32 %v326, 7
    %329 = vset.pattern.permute.xlu0 %v327
    %330 = vperm.xlu0 %329, %v325
    %v331 = vpop.permute.xlu0 %330
    %v332 = vlaneseq
    %v333 = vshrl.u32 %v332, 7
    %v334 = vadd.s32 %v333, 8
    %335 = vset.pattern.permute.xlu0 %v334
    %336 = vperm.xlu0 %335, %v325
    %v337 = vpop.permute.xlu0 %336
    %v338 = vperm.slane %v248, 2
    %v339 = vlaneseq
    %v340 = vshrl.u32 %v339, 7
    %342 = vset.pattern.permute.xlu0 %v340
    %343 = vperm.xlu0 %342, %v338
    %v344 = vpop.permute.xlu0 %343
    %v345 = vlaneseq
    %v346 = vshrl.u32 %v345, 7
    %v347 = vadd.s32 %v346, 8
    %348 = vset.pattern.permute.xlu0 %v347
    %349 = vperm.xlu0 %348, %v338
    %v350 = vpop.permute.xlu0 %349
    %v351 = vperm.slane %v248, 3
    %v352 = vlaneseq
    %v353 = vshrl.u32 %v352, 7
    %355 = vset.pattern.permute.xlu0 %v353
    %356 = vperm.xlu0 %355, %v351
    %v357 = vpop.permute.xlu0 %356
    %v358 = vlaneseq
    %v359 = vshrl.u32 %v358, 7
    %v360 = vadd.s32 %v359, 8
    %361 = vset.pattern.permute.xlu0 %v360
    %362 = vperm.xlu0 %361, %v351
    %v363 = vpop.permute.xlu0 %362
    %v364 = vperm.slane %v248, 4
    %v365 = vlaneseq
    %v366 = vshrl.u32 %v365, 7
    %368 = vset.pattern.permute.xlu0 %v366
    %369 = vperm.xlu0 %368, %v364
    %v370 = vpop.permute.xlu0 %369
    %v371 = vlaneseq
    %v372 = vshrl.u32 %v371, 7
    %v373 = vadd.s32 %v372, 8
    %374 = vset.pattern.permute.xlu0 %v373
    %375 = vperm.xlu0 %374, %v364
    %v376 = vpop.permute.xlu0 %375
    %v377 = vperm.slane %v248, 5
    %v378 = vlaneseq
    %v379 = vshrl.u32 %v378, 7
    %381 = vset.pattern.permute.xlu0 %v379
    %382 = vperm.xlu0 %381, %v377
    %v383 = vpop.permute.xlu0 %382
    %v384 = vlaneseq
    %v385 = vshrl.u32 %v384, 7
    %v386 = vadd.s32 %v385, 8
    %387 = vset.pattern.permute.xlu0 %v386
    %388 = vperm.xlu0 %387, %v377
    %v389 = vpop.permute.xlu0 %388
    %v390 = vperm.slane %v248, 6
    %v391 = vlaneseq
    %v392 = vshrl.u32 %v391, 7
    %394 = vset.pattern.permute.xlu0 %v392
    %395 = vperm.xlu0 %394, %v390
    %v396 = vpop.permute.xlu0 %395
    %v397 = vlaneseq
    %v398 = vshrl.u32 %v397, 7
    %v399 = vadd.s32 %v398, 8
    %400 = vset.pattern.permute.xlu0 %v399
    %401 = vperm.xlu0 %400, %v390
    %v402 = vpop.permute.xlu0 %401
    %v403 = vperm.slane %v248, 7
    %v404 = vlaneseq
    %v405 = vshrl.u32 %v404, 7
    %407 = vset.pattern.permute.xlu0 %v405
    %408 = vperm.xlu0 %407, %v403
    %v409 = vpop.permute.xlu0 %408
    %v410 = vlaneseq
    %v411 = vshrl.u32 %v410, 7
    %v412 = vadd.s32 %v411, 8
    %413 = vset.pattern.permute.xlu0 %v412
    %414 = vperm.xlu0 %413, %v403
    %v415 = vpop.permute.xlu0 %414
    %v416 = vsub.f32 %v318, 1.0
    %v417 = vsub.f32 %v324, 1.0
    %v418 = vsub.f32 %v331, 1.0
    %v419 = vsub.f32 %v337, 1.0
    %v420 = vsub.f32 %v344, 1.0
    %v421 = vsub.f32 %v350, 1.0
    %v422 = vsub.f32 %v357, 1.0
    %v423 = vsub.f32 %v363, 1.0
    %v424 = vsub.f32 %v370, 1.0
    %v425 = vsub.f32 %v376, 1.0
    %v426 = vsub.f32 %v383, 1.0
    %v427 = vsub.f32 %v389, 1.0
    %v428 = vsub.f32 %v396, 1.0
    %v429 = vsub.f32 %v402, 1.0
    %v430 = vsub.f32 %v409, 1.0
    %v431 = vsub.f32 %v415, 1.0
    %v432 = vmul.f32 %v416, 1e+30
    %v433 = vmul.f32 %v417, 1e+30
    %v434 = vmul.f32 %v418, 1e+30
    %v435 = vmul.f32 %v419, 1e+30
    %v436 = vmul.f32 %v420, 1e+30
    %v437 = vmul.f32 %v421, 1e+30
    %v438 = vmul.f32 %v422, 1e+30
    %v439 = vmul.f32 %v423, 1e+30
    %v440 = vmul.f32 %v424, 1e+30
    %v441 = vmul.f32 %v425, 1e+30
    %v442 = vmul.f32 %v426, 1e+30
    %v443 = vmul.f32 %v427, 1e+30
    %v444 = vmul.f32 %v428, 1e+30
    %v445 = vmul.f32 %v429, 1e+30
    %v446 = vmul.f32 %v430, 1e+30
    %v447 = vmul.f32 %v431, 1e+30
    %v448 = vadd.f32 %v310, %v432
    %v449 = vadd.f32 %v311, %v433
    %v450 = vadd.f32 %v310, %v434
    %v451 = vadd.f32 %v311, %v435
    %v452 = vadd.f32 %v310, %v436
    %v453 = vadd.f32 %v311, %v437
    %v454 = vadd.f32 %v310, %v438
    %v455 = vadd.f32 %v311, %v439
    %v456 = vadd.f32 %v310, %v440
    %v457 = vadd.f32 %v311, %v441
    %v458 = vadd.f32 %v310, %v442
    %v459 = vadd.f32 %v311, %v443
    %v460 = vadd.f32 %v310, %v444
    %v461 = vadd.f32 %v311, %v445
    %v462 = vadd.f32 %v310, %v446
    %v463 = vadd.f32 %v311, %v447
    %v464 = vsel %vm135, %v448, -inf
    %v465 = vsel %vm135, %v449, -inf
    %v466 = vmax.f32 %v464, %v465
    %v467 = vrot.slane %v466, 4
    %v468 = vmax.f32 %v466, %v467
    %v469 = vrot.slane %v468, 2
    %v470 = vmax.f32 %v468, %v469
    %v471 = vrot.slane %v470, 1
    %v472 = vmax.f32 %v470, %v471
    %v473 = vsel %vm135, %v450, -inf
    %v474 = vsel %vm135, %v451, -inf
    %v475 = vmax.f32 %v473, %v474
    %v476 = vrot.slane %v475, 4
    %v477 = vmax.f32 %v475, %v476
    %v478 = vrot.slane %v477, 2
    %v479 = vmax.f32 %v477, %v478
    %v480 = vrot.slane %v479, 1
    %v481 = vmax.f32 %v479, %v480
    %v482 = vsel %vm135, %v452, -inf
    %v483 = vsel %vm135, %v453, -inf
    %v484 = vmax.f32 %v482, %v483
    %v485 = vrot.slane %v484, 4
    %v486 = vmax.f32 %v484, %v485
    %v487 = vrot.slane %v486, 2
    %v488 = vmax.f32 %v486, %v487
    %v489 = vrot.slane %v488, 1
    %v490 = vmax.f32 %v488, %v489
    %v491 = vsel %vm135, %v454, -inf
    %v492 = vsel %vm135, %v455, -inf
    %v493 = vmax.f32 %v491, %v492
    %v494 = vrot.slane %v493, 4
    %v495 = vmax.f32 %v493, %v494
    %v496 = vrot.slane %v495, 2
    %v497 = vmax.f32 %v495, %v496
    %v498 = vrot.slane %v497, 1
    %v499 = vmax.f32 %v497, %v498
    %v500 = vsel %vm135, %v456, -inf
    %v501 = vsel %vm135, %v457, -inf
    %v502 = vmax.f32 %v500, %v501
    %v503 = vrot.slane %v502, 4
    %v504 = vmax.f32 %v502, %v503
    %v505 = vrot.slane %v504, 2
    %v506 = vmax.f32 %v504, %v505
    %v507 = vrot.slane %v506, 1
    %v508 = vmax.f32 %v506, %v507
    %v509 = vsel %vm135, %v458, -inf
    %v510 = vsel %vm135, %v459, -inf
    %v511 = vmax.f32 %v509, %v510
    %v512 = vrot.slane %v511, 4
    %v513 = vmax.f32 %v511, %v512
    %v514 = vrot.slane %v513, 2
    %v515 = vmax.f32 %v513, %v514
    %v516 = vrot.slane %v515, 1
    %v517 = vmax.f32 %v515, %v516
    %v518 = vsel %vm135, %v460, -inf
    %v519 = vsel %vm135, %v461, -inf
    %v520 = vmax.f32 %v518, %v519
    %v521 = vrot.slane %v520, 4
    %v522 = vmax.f32 %v520, %v521
    %v523 = vrot.slane %v522, 2
    %v524 = vmax.f32 %v522, %v523
    %v525 = vrot.slane %v524, 1
    %v526 = vmax.f32 %v524, %v525
    %v527 = vsel %vm135, %v462, -inf
    %v528 = vsel %vm135, %v463, -inf
    %v529 = vmax.f32 %v527, %v528
    %v530 = vrot.slane %v529, 4
    %v531 = vmax.f32 %v529, %v530
    %v532 = vrot.slane %v531, 2
    %v533 = vmax.f32 %v531, %v532
    %v534 = vrot.slane %v533, 1
    %v535 = vmax.f32 %v533, %v534
    %v536 = vmax.f32 %v472, -1e+30
    %v537 = vmax.f32 %v481, -1e+30
    %v538 = vmax.f32 %v490, -1e+30
    %v539 = vmax.f32 %v499, -1e+30
    %v540 = vmax.f32 %v508, -1e+30
    %v541 = vmax.f32 %v517, -1e+30
    %v542 = vmax.f32 %v526, -1e+30
    %v543 = vmax.f32 %v535, -1e+30
    %vm544 = vcmp.gt.f32.partialorder %v536, -5e+29
    %vm545 = vcmp.gt.f32.partialorder %v537, -5e+29
    %vm546 = vcmp.gt.f32.partialorder %v538, -5e+29
    %vm547 = vcmp.gt.f32.partialorder %v539, -5e+29
    %vm548 = vcmp.gt.f32.partialorder %v540, -5e+29
    %vm549 = vcmp.gt.f32.partialorder %v541, -5e+29
    %vm550 = vcmp.gt.f32.partialorder %v542, -5e+29
    %vm551 = vcmp.gt.f32.partialorder %v543, -5e+29
    %v552 = vsel %vm544, %v536, 0.0
    %v553 = vsel %vm545, %v537, 0.0
    %v554 = vsel %vm546, %v538, 0.0
    %v555 = vsel %vm547, %v539, 0.0
    %v556 = vsel %vm548, %v540, 0.0
    %v557 = vsel %vm549, %v541, 0.0
    %v558 = vsel %vm550, %v542, 0.0
    %v559 = vsel %vm551, %v543, 0.0
    %s560 = sld [smem:[#allocation2]]
    %s561 = sadd.f32 %s560, 1.0
    %v562 = vstv %s561
    %v563 = vmul.f32 %v562, %v236
    %vm572 = vcmask 1041409
    %v573 = vsel %vm572, %v553, %v552
    %vm574 = vcmask 1042434
    %v575 = vsel %vm574, %v554, %v573
    %vm576 = vcmask 1043459
    %v577 = vsel %vm576, %v555, %v575
    %vm578 = vcmask 1044484
    %v579 = vsel %vm578, %v556, %v577
    %vm580 = vcmask 1045509
    %v581 = vsel %vm580, %v557, %v579
    %vm582 = vcmask 1046534
    %v583 = vsel %vm582, %v558, %v581
    %vm584 = vcmask 1047559
    %v585 = vsel %vm584, %v559, %v583
    %v587 = vadd.f32 %v563, %v585
    %v588 = vld [vmem:[%s14] sm:$0xff]
    %v589 = vld [vmem:[%s14 + $0x8] sm:$0xff]
    %v590 = vld [vmem:[%s15] sm:$0x1]
    %v592 = vperm.slane %v590, 0
    %v595 = vsel %vm135, %v587, 0
    %597 = vmatpush.msra.mxu0 0.0
    %598 = vmatpush.msra.mxu0 0.0
    %599 = vmatpush.msra.mxu0 0.0
    %600 = vmatpush.msra.mxu0 0.0
    %601 = vmatpush.msra.mxu0 0.0
    %602 = vmatpush.msra.mxu0 0.0
    %603 = vmatpush.msra.mxu0 0.0
    %604 = vmatpush.msra.mxu0 0.0
    %605 = vmatpush.msra.mxu0 0.0
    %606 = vmatpush.msra.mxu0 0.0
    %607 = vmatpush.msra.mxu0 0.0
    %608 = vmatpush.msra.mxu0 0.0
    %609 = vmatpush.msra.mxu0 0.0
    %610 = vmatpush.msra.mxu0 0.0
    %611 = vmatpush.msra.mxu0 %v589
    %612 = vmatpush.msra.mxu0 %v588
    %613 = vmatmul.f32.gmra.mxu0 %v595
    %v614 = vpop.f32.mrf.mxu0
    %v615 = vadd.f32 %v592, %v614
    %616 = vdwg.mxu0
    %vm617 = vcmp.gt.f32.partialorder %v615, 0.0
    %v618 = vmul.f32 %v615, 0.01
    %v619 = vsel %vm617, %v615, %v618
    %v620 = vld [vmem:[%s16] sm:$0xff]
    %v621 = vld [vmem:[%s16 + $0x8] sm:$0xff]
    %v622 = vld [vmem:[%s17] sm:$0x1]
    %v624 = vperm.slane %v622, 0
    %v627 = vsel %vm135, %v619, 0
    %629 = vmatpush.msra.mxu0 0.0
    %630 = vmatpush.msra.mxu0 0.0
    %631 = vmatpush.msra.mxu0 0.0
    %632 = vmatpush.msra.mxu0 0.0
    %633 = vmatpush.msra.mxu0 0.0
    %634 = vmatpush.msra.mxu0 0.0
    %635 = vmatpush.msra.mxu0 0.0
    %636 = vmatpush.msra.mxu0 0.0
    %637 = vmatpush.msra.mxu0 0.0
    %638 = vmatpush.msra.mxu0 0.0
    %639 = vmatpush.msra.mxu0 0.0
    %640 = vmatpush.msra.mxu0 0.0
    %641 = vmatpush.msra.mxu0 0.0
    %642 = vmatpush.msra.mxu0 0.0
    %643 = vmatpush.msra.mxu0 %v621
    %644 = vmatpush.msra.mxu0 %v620
    %645 = vmatmul.f32.gmra.mxu0 %v627
    %v646 = vpop.f32.mrf.mxu0
    %v647 = vadd.f32 %v624, %v646
    %648 = vdwg.mxu0
    %v649 = vld [vmem:[%s5] sm:$0x1]
    %v650 = vperm.slane %v649, 0
    %vm651 = vcmp.eq.s32.totalorder %v238, %v650
    %v652 = vsel %vm651, 1, 0
    %v653 = vcvt.s32.f32 %v652
    %v654 = vperm.slane %v653, 0
    %v655 = vlaneseq
    %v656 = vshrl.u32 %v655, 7
    %658 = vset.pattern.permute.xlu0 %v656
    %659 = vperm.xlu0 %658, %v654
    %v660 = vpop.permute.xlu0 %659
    %v661 = vperm.slane %v653, 1
    %v662 = vlaneseq
    %v663 = vshrl.u32 %v662, 7
    %665 = vset.pattern.permute.xlu0 %v663
    %666 = vperm.xlu0 %665, %v661
    %v667 = vpop.permute.xlu0 %666
    %v668 = vsub.f32 %v660, 1.0
    %v669 = vsub.f32 %v667, 1.0
    %v670 = vmul.f32 %v668, 1e+30
    %v671 = vmul.f32 %v669, 1e+30
    %v672 = vadd.f32 %v647, %v670
    %v673 = vadd.f32 %v647, %v671
    %v674 = vsel %vm135, %v672, -inf
    %v675 = vrot.slane %v674, 4
    %v676 = vmax.f32 %v674, %v675
    %v677 = vrot.slane %v676, 2
    %v678 = vmax.f32 %v676, %v677
    %v679 = vrot.slane %v678, 1
    %v680 = vmax.f32 %v678, %v679
    %v681 = vsel %vm135, %v673, -inf
    %v682 = vrot.slane %v681, 4
    %v683 = vmax.f32 %v681, %v682
    %v684 = vrot.slane %v683, 2
    %v685 = vmax.f32 %v683, %v684
    %v686 = vrot.slane %v685, 1
    %v687 = vmax.f32 %v685, %v686
    %v688 = vmax.f32 %v680, -1e+30
    %v689 = vmax.f32 %v687, -1e+30
    %v690 = vld [vmem:[%s18] sm:$0xff]
    %v691 = vld [vmem:[%s18 + $0x8] sm:$0xff]
    %v692 = vld [vmem:[%s19] sm:$0x1]
    %v694 = vperm.slane %v692, 0
    %v698 = vsel %vm572, %v689, %v688
    %v699 = vsel %vm135, %v698, 0
    %701 = vmatpush.msra.mxu0 0.0
    %702 = vmatpush.msra.mxu0 0.0
    %703 = vmatpush.msra.mxu0 0.0
    %704 = vmatpush.msra.mxu0 0.0
    %705 = vmatpush.msra.mxu0 0.0
    %706 = vmatpush.msra.mxu0 0.0
    %707 = vmatpush.msra.mxu0 0.0
    %708 = vmatpush.msra.mxu0 0.0
    %709 = vmatpush.msra.mxu0 0.0
    %710 = vmatpush.msra.mxu0 0.0
    %711 = vmatpush.msra.mxu0 0.0
    %712 = vmatpush.msra.mxu0 0.0
    %713 = vmatpush.msra.mxu0 0.0
    %714 = vmatpush.msra.mxu0 0.0
    %715 = vmatpush.msra.mxu0 %v691
    %716 = vmatpush.msra.mxu0 %v690
    %717 = vmatmul.f32.gmra.mxu0 %v699
    %v718 = vpop.f32.mrf.mxu0
    %v719 = vadd.f32 %v694, %v718
    %720 = vdwg.mxu0
    %vm721 = vcmp.gt.f32.partialorder %v719, 0.0
    %v722 = vmul.f32 %v719, 0.01
    %v723 = vsel %vm721, %v719, %v722
    %v724 = vld [vmem:[%s20] sm:$0xff]
    %v725 = vld [vmem:[%s20 + $0x8] sm:$0xff]
    %v726 = vld [vmem:[#allocation3] sm:$0x1]
    %v728 = vperm.slane %v726, 0
    %v731 = vsel %vm135, %v723, 0
    %733 = vmatpush.msra.mxu0 0.0
    %734 = vmatpush.msra.mxu0 0.0
    %735 = vmatpush.msra.mxu0 0.0
    %736 = vmatpush.msra.mxu0 0.0
    %737 = vmatpush.msra.mxu0 0.0
    %738 = vmatpush.msra.mxu0 0.0
    %739 = vmatpush.msra.mxu0 0.0
    %740 = vmatpush.msra.mxu0 0.0
    %741 = vmatpush.msra.mxu0 0.0
    %742 = vmatpush.msra.mxu0 0.0
    %743 = vmatpush.msra.mxu0 0.0
    %744 = vmatpush.msra.mxu0 0.0
    %745 = vmatpush.msra.mxu0 0.0
    %746 = vmatpush.msra.mxu0 0.0
    %747 = vmatpush.msra.mxu0 %v725
    %748 = vmatpush.msra.mxu0 %v724
    %749 = vmatmul.f32.gmra.mxu0 %v731
    %v750 = vpop.f32.mrf.mxu0
    %v751 = vadd.f32 %v728, %v750
    %752 = vdwg.mxu0
    %vm753 = vcmask 1024
    %754 = vst.msk [vmem:[%s22] sm:$0x3] %vm753, %v751
    %v755 = vxor.u32 %v751, 2147483648
    %v756 = vmul.f32 %v755, 1.442695
    %v757 = vpow.pop %v756
    %v758 = vadd.f32 %v757, 1.0
    %v759 = vrcp.pop %v758
    %v760 = vmul.f32 %v758, %v759
    %v761 = vsub.f32 1.0, %v760
    %v762 = vmul.f32 %v759, %v761
    %v763 = vadd.f32 %v759, %v762
    %vm764 = vweird.f32 %v758
    %vm765 = vweird.f32 %v759
    %vm766 = vmor %vm764, %vm765
    %v767 = vsel %vm766, %v759, %v763
    %v768 = vand.u32 2147483647, %v758
    %vm769 = vcmp.eq.f32.partialorder %v768, 8.507059e+37
    %v770 = vand.u32 %v758, 2147483648
    %v771 = vor.u32 1.1754944e-38, %v770
    %v772 = vsel %vm769, %v771, %v767
    %v773 = vmul.f32 1.0, %v772
    %774 = vst.msk [vmem:[%s23] sm:$0x3] %vm753, %v773
    // Predicated region
    $region94: #{gin_forward.1} parent=1 // pred_check
      _
    $region95: #{gin_forward.1} parent=1 // pred_check_branch
      %776 = sbr.rel (0) target = $region97
    $region96: #{gin_forward.1} parent=1 // pred_region
      _
    $region97: #{gin_forward.1} parent=1 // pred_fallthru
      _
    // Predicated region
    $region98: #{gin_forward.1} parent=1 // pred_check
      _
    $region99: #{gin_forward.1} parent=1 // pred_check_branch
      %778 = sbr.rel (0) target = $region101
    $region100: #{gin_forward.1} parent=1 // pred_region
      _
    $region101: #{gin_forward.1} parent=1 // pred_fallthru
      _
    // Predicated region
    $region102: #{gin_forward.1} parent=1 // pred_check
      _
    $region103: #{gin_forward.1} parent=1 // pred_check_branch
      %780 = sbr.rel (0) target = $region105
    $region104: #{gin_forward.1} parent=1 // pred_region
      _
    $region105: #{gin_forward.1} parent=1 // pred_fallthru
      _
    // Predicated region
    $region106: #{gin_forward.1} parent=1 // pred_check
      _
    $region107: #{gin_forward.1} parent=1 // pred_check_branch
      %782 = sbr.rel (0) target = $region109
    $region108: #{gin_forward.1} parent=1 // pred_region
      _
    $region109: #{gin_forward.1} parent=1 // pred_fallthru
      _
    %783 = vsyncpa [#allocation5], 1

</llo_original>
